<compile_context>
chip_gen: v5e
topology: v5e:2x2
jax: 0.10.0
libtpu: 0.0.40
codegen_flags: <defaults>
</compile_context>

<pallas_src>
import functools

import jax
import jax.numpy as jnp
from jax.experimental import pallas as pl
from jax.experimental.pallas import tpu as pltpu

LANE = 128  # TPU vreg lane width; hidden/output feature dims are padded to this.


def _round_up(n, m):
    return ((n + m - 1) // m) * m


# ----------------------------- Pallas kernel ------------------------------ #

def _mlp_fused_kernel(x_ref, w0_ref, wstack_ref, shift_ref, o_ref, *, num_layers):
    """Fully fused MLP forward (eval-mode BN + bias folded into w/shift).

      x_ref     : [B, Din]        f32  VMEM
      w0_ref    : [Din, D]        bf16 VMEM (layer 0 weight, BN scale folded)
      wstack_ref: [L-1, D, D]     bf16 VMEM (layers 1..L-1 weights, padded)
      shift_ref : [L, D]          f32  VMEM (bias*scale + BN shift per layer)
      o_ref     : [B, D]          f32  VMEM (padded logits)

    Every layer except the last applies ReLU. Matmuls take bf16 operands on
    the MXU with f32 accumulation; the epilogue (+shift, ReLU) is f32.
    """
    shifts = shift_ref[...]                       # [L, D] f32 (tiny)

    h = x_ref[...].astype(jnp.bfloat16)
    # Layer 0: [B, Din] @ [Din, D]
    h = jnp.dot(h, w0_ref[...], preferred_element_type=jnp.float32)
    h = h + shifts[0:1, :]
    h = jnp.maximum(h, 0.0)

    for i in range(1, num_layers):
        # Load each weight slab right before its dot (keep vreg pressure low).
        w = wstack_ref[i - 1]                     # [D, D] bf16
        h = jnp.dot(h.astype(jnp.bfloat16), w, preferred_element_type=jnp.float32)
        h = h + shifts[i:i + 1, :]
        if i < num_layers - 1:
            h = jnp.maximum(h, 0.0)

    o_ref[...] = h.astype(o_ref.dtype)


def make_mlp_forward(packed_params, num_classes):
    """Build a jitted forward: x [B, Din] -> logits [B, num_classes]."""
    w0, wstack, shifts = packed_params
    num_layers = shifts.shape[0]
    din = w0.shape[0]
    d_pad = w0.shape[1]

    kernel = functools.partial(_mlp_fused_kernel, num_layers=num_layers)
    vmem_spec = pl.BlockSpec(memory_space=pltpu.MemorySpace.VMEM)

    def forward(x):
        b = x.shape[0]
        flops = 2 * b * (din * d_pad + (num_layers - 1) * d_pad * d_pad)
        bytes_accessed = (b * din * 4            # x (f32)
                          + w0.size * 2          # bf16 weights
                          + wstack.size * 2
                          + shifts.size * 4      # f32 shifts
                          + b * d_pad * 4)       # padded output (f32)
        out_padded = pl.pallas_call(
            kernel,
            out_shape=jax.ShapeDtypeStruct((b, d_pad), jnp.float32),
            in_specs=[vmem_spec] * 4,
            out_specs=vmem_spec,
            cost_estimate=pl.CostEstimate(flops=int(flops),
                                          transcendentals=0,
                                          bytes_accessed=int(bytes_accessed)),
        )(x, w0, wstack, shifts)
        # Padded logit columns are exactly 0.0; slice the true logits.
        # (If consuming padded logits directly downstream, mask them to -inf.)
        return out_padded[:, :num_classes]

    return jax.jit(forward)


# ------------------------- Parameter construction ------------------------- #

def init_mlp_params(key, depth, dim_input, dim_latent, num_classes, norm):
    """Deterministic parameters mirroring the PyTorch module's layer shapes.

    Returns a list of dicts with the *unfolded* parameters (used by the
    pure-JAX reference): transposed Linear weight [in, out], bias, and the
    eval-mode BatchNorm folded as a per-feature (scale, shift) affine.
    """
    params = []
    eps = 1e-5
    for layeridx in range(depth):
        if layeridx == 0:
            din, dout = dim_input, dim_latent
            last = False
        elif layeridx == depth - 1:
            din, dout = dim_latent, num_classes
            last = True
        else:
            din, dout = dim_latent, dim_latent
            last = False

        key, kw, kb, kg, kbeta, km, kv = jax.random.split(key, 7)
        bound = 1.0 / jnp.sqrt(jnp.float32(din))
        # PyTorch Linear weight is [out, in]; store it transposed [in, out].
        w_t = jax.random.uniform(kw, (din, dout), jnp.float32, -bound, bound)
        b = jax.random.uniform(kb, (dout,), jnp.float32, -bound, bound)

        if (not last) and norm == 'BatchNorm':
            # Deterministic (synthetic) BatchNorm parameters / running stats.
            gamma = 1.0 + 0.1 * jax.random.normal(kg, (dout,), jnp.float32)
            beta = 0.1 * jax.random.normal(kbeta, (dout,), jnp.float32)
            run_mean = 0.1 * jax.random.normal(km, (dout,), jnp.float32)
            run_var = jnp.abs(
                1.0 + 0.1 * jax.random.normal(kv, (dout,), jnp.float32))
            scale = gamma / jnp.sqrt(run_var + eps)
            shift = beta - run_mean * scale
        else:
            scale = jnp.ones((dout,), jnp.float32)
            shift = jnp.zeros((dout,), jnp.float32)

        params.append(dict(w_t=w_t, b=b, scale=scale, shift=shift,
                           relu=(not last)))
    return params


def fold_and_pad_params(params, dim_input):
    """Fold (bias, BN scale/shift) into the weights, pad every hidden/output
    feature dim to a single common lane-aligned width D, and pack into three
    kernel operands:
        w0     [dim_input, D]   bf16
        wstack [L-1, D, D]      bf16   (layers 1..L-1)
        shifts [L, D]           f32
    Padded activation columns are exactly zero (zero weight columns + zero
    shift, ReLU(0)=0), and padded weight rows are zero, so numerics match the
    unpadded model (up to bf16 weight rounding).
    """
    num_layers = len(params)
    assert num_layers >= 2, "need at least one hidden + one output layer"

    d_pad = LANE
    for p in params:
        d_pad = max(d_pad, _round_up(p["w_t"].shape[1], LANE))

    shifts = jnp.zeros((num_layers, d_pad), jnp.float32)
    w_mats = []
    din_prev = dim_input  # input feature dim is left unpadded (matches x).
    for li, p in enumerate(params):
        w_f = p["w_t"] * p["scale"][None, :]          # [din, dout]
        s_f = p["b"] * p["scale"] + p["shift"]        # [dout]
        din, dout = w_f.shape
        w_pad = jnp.zeros((din_prev, d_pad), jnp.float32)
        w_pad = w_pad.at[:din, :dout].set(w_f)
        shifts = shifts.at[li, :dout].set(s_f)
        w_mats.append(w_pad)
        din_prev = d_pad

    w0 = w_mats[0].astype(jnp.bfloat16)
    wstack = jnp.stack(w_mats[1:], axis=0).astype(jnp.bfloat16)
    return w0, wstack, shifts


# --------------------------- Pure-JAX references --------------------------- #

def mlp_forward_ref(x, params):
    """Unpadded, unfolded f32 reference (matches PyTorch eval-mode math)."""
    for p in params:
        y = x @ p["w_t"] + p["b"]
        y = y * p["scale"] + p["shift"]
        if p["relu"]:
            y = jnp.maximum(y, 0.0)
        x = y
    return x


def mlp_forward_packed_ref(x, w0, wstack, shifts, num_classes):
    """Reference using the exact packed bf16/padded params (kernel math)."""
    num_layers = shifts.shape[0]
    h = x.astype(jnp.bfloat16)
    h = jnp.dot(h, w0, preferred_element_type=jnp.float32) + shifts[0:1, :]
    h = jnp.maximum(h, 0.0)
    for i in range(1, num_layers):
        h = jnp.dot(h.astype(jnp.bfloat16), wstack[i - 1],
                    preferred_element_type=jnp.float32) + shifts[i:i + 1, :]
        if i < num_layers - 1:
            h = jnp.maximum(h, 0.0)
    return h[:, :num_classes]


# --------------------------------- main ----------------------------------- #

if __name__ == "__main__":
    # Small config consistent with the module's __init__:
    #   classifier_depth=3, classifier_input_dim=32, classifier_latent_dim=64,
    #   classifier_Norm='BatchNorm', num_classes=10
    DEPTH = 3
    DIM_INPUT = 32
    DIM_LATENT = 64
    NUM_CLASSES = 10
    NORM = 'BatchNorm'
    BATCH = 8

    key = jax.random.PRNGKey(0)
    key, kx = jax.random.split(key)
    x = jax.random.normal(kx, (BATCH, DIM_INPUT), jnp.float32)

    params = init_mlp_params(key, DEPTH, DIM_INPUT, DIM_LATENT,
                             NUM_CLASSES, NORM)
    packed = fold_and_pad_params(params, DIM_INPUT)

    mlp_forward = make_mlp_forward(packed, NUM_CLASSES)

    out = mlp_forward(x)
    out = jax.block_until_ready(out)
    assert out.shape == (BATCH, NUM_CLASSES), out.shape

    # Tight check vs. the exact packed (bf16, padded, folded) math.
    ref_packed = mlp_forward_packed_ref(x, *packed, NUM_CLASSES)
    assert jnp.allclose(out, ref_packed, atol=1e-2, rtol=1e-2), \
        float(jnp.max(jnp.abs(out - ref_packed)))

    # Loose check vs. the unfolded f32 reference (bf16 weight drift expected).
    ref_f32 = mlp_forward_ref(x, params)
    assert jnp.allclose(out, ref_f32, atol=5e-2, rtol=5e-2), \
        float(jnp.max(jnp.abs(out - ref_f32)))

    print("KERNEL_OK")
</pallas_src>

<mosaic_0001>
module attributes {stable_mosaic.version = 11 : i64} {
  func.func @_mlp_fused_kernel(%arg0: memref<8x32xf32, #tpu.memory_space<vmem>>, %arg1: memref<32x128xbf16, #tpu.memory_space<vmem>>, %arg2: memref<2x128x128xbf16, #tpu.memory_space<vmem>>, %arg3: memref<3x128xf32, #tpu.memory_space<vmem>>, %arg4: memref<8x128xf32, #tpu.memory_space<vmem>>) attributes {dimension_semantics = [], scalar_prefetch = 0 : i64, scratch_operands = 0 : i64, tpu.core_type = #tpu.core_type<tc>} {
    %c0 = arith.constant 0 : index
    %c0_0 = arith.constant 0 : index
    %0 = vector.load %arg3[%c0, %c0_0] : memref<3x128xf32, #tpu.memory_space<vmem>>, vector<3x128xf32>
    %c0_1 = arith.constant 0 : index
    %c0_2 = arith.constant 0 : index
    %1 = vector.load %arg0[%c0_1, %c0_2] : memref<8x32xf32, #tpu.memory_space<vmem>>, vector<8x32xf32>
    %2 = arith.truncf %1 : vector<8x32xf32> to vector<8x32xbf16>
    %c0_3 = arith.constant 0 : index
    %c0_4 = arith.constant 0 : index
    %3 = vector.load %arg1[%c0_3, %c0_4] : memref<32x128xbf16, #tpu.memory_space<vmem>>, vector<32x128xbf16>
    %cst = arith.constant dense<0.000000e+00> : vector<8x128xf32>
    %4 = tpu.matmul %2, %3, %cst {dimension_numbers = #tpu.dot_dimension_numbers<[1], [0], [0], [1], [0, 0, 1, 1], [], []>} : vector<8x32xbf16>, vector<32x128xbf16>, vector<8x128xf32> -> vector<8x128xf32>
    %5 = vector.extract_strided_slice %0 {offsets = [0, 0], sizes = [1, 128], strides = [1, 1]} : vector<3x128xf32> to vector<1x128xf32>
    %6 = vector.broadcast %5 : vector<1x128xf32> to vector<8x128xf32>
    %7 = arith.addf %4, %6 : vector<8x128xf32>
    %cst_5 = arith.constant 0.000000e+00 : f32
    %8 = vector.broadcast %cst_5 : f32 to vector<8x128xf32>
    %9 = arith.maximumf %7, %8 : vector<8x128xf32>
    %c0_6 = arith.constant 0 : index
    %c0_7 = arith.constant 0 : index
    %c0_8 = arith.constant 0 : index
    %10 = vector.load %arg2[%c0_6, %c0_7, %c0_8] : memref<2x128x128xbf16, #tpu.memory_space<vmem>>, vector<1x128x128xbf16>
    %11 = vector.shape_cast %10 : vector<1x128x128xbf16> to vector<128x128xbf16>
    %12 = arith.truncf %9 : vector<8x128xf32> to vector<8x128xbf16>
    %cst_9 = arith.constant dense<0.000000e+00> : vector<8x128xf32>
    %13 = tpu.matmul %12, %11, %cst_9 {dimension_numbers = #tpu.dot_dimension_numbers<[1], [0], [0], [1], [0, 0, 1, 1], [], []>} : vector<8x128xbf16>, vector<128x128xbf16>, vector<8x128xf32> -> vector<8x128xf32>
    %14 = vector.extract_strided_slice %0 {offsets = [1, 0], sizes = [1, 128], strides = [1, 1]} : vector<3x128xf32> to vector<1x128xf32>
    %15 = vector.broadcast %14 : vector<1x128xf32> to vector<8x128xf32>
    %16 = arith.addf %13, %15 : vector<8x128xf32>
    %cst_10 = arith.constant 0.000000e+00 : f32
    %17 = vector.broadcast %cst_10 : f32 to vector<8x128xf32>
    %18 = arith.maximumf %16, %17 : vector<8x128xf32>
    %c1 = arith.constant 1 : index
    %c0_11 = arith.constant 0 : index
    %c0_12 = arith.constant 0 : index
    %19 = vector.load %arg2[%c1, %c0_11, %c0_12] : memref<2x128x128xbf16, #tpu.memory_space<vmem>>, vector<1x128x128xbf16>
    %20 = vector.shape_cast %19 : vector<1x128x128xbf16> to vector<128x128xbf16>
    %21 = arith.truncf %18 : vector<8x128xf32> to vector<8x128xbf16>
    %cst_13 = arith.constant dense<0.000000e+00> : vector<8x128xf32>
    %22 = tpu.matmul %21, %20, %cst_13 {dimension_numbers = #tpu.dot_dimension_numbers<[1], [0], [0], [1], [0, 0, 1, 1], [], []>} : vector<8x128xbf16>, vector<128x128xbf16>, vector<8x128xf32> -> vector<8x128xf32>
    %23 = vector.extract_strided_slice %0 {offsets = [2, 0], sizes = [1, 128], strides = [1, 1]} : vector<3x128xf32> to vector<1x128xf32>
    %24 = vector.broadcast %23 : vector<1x128xf32> to vector<8x128xf32>
    %25 = arith.addf %22, %24 : vector<8x128xf32>
    %c0_14 = arith.constant 0 : index
    %c0_15 = arith.constant 0 : index
    %26 = vector.load %arg4[%c0_14, %c0_15] : memref<8x128xf32, #tpu.memory_space<vmem>>, vector<8x128xf32>
    tpu.vector_store %arg4[%c0_14, %c0_15], %25 {strides = array<i32>} : memref<8x128xf32, #tpu.memory_space<vmem>>, vector<8x128xf32>,
    return
  }
}

</mosaic_0001>

<llo_original>
// kernel: forward.1
$region0: #{forward.1}
  #allocation0 [shape = 'u32[]', space=smem, size = 0x4, offset = 0x4, fixed_abs, tag = 'smem constant byte address 0x4 - core index']
  #allocation1 [shape = 'u32[72,128]{1,0:T(1,128)}', space=vmem, size = 0x9000, scoped, tag = 'internal scratch']
  %s0 = inlined_call_operand.hbm [shape: f32[8,32], index: 0, kind: input, shape index: {}]
  %s1 = inlined_call_operand.hbm [shape: bf16[32,128], index: 1, kind: input, shape index: {}]
  %s2 = inlined_call_operand.hbm [shape: bf16[2,128,128], index: 2, kind: input, shape index: {}]
  %s3 = inlined_call_operand.hbm [shape: f32[3,128], index: 3, kind: input, shape index: {}]
  %s4 = inlined_call_operand.hbm [shape: f32[8,128], index: 4, kind: output, shape index: {}]
  %s5 = sld [smem:[#allocation0]]
  $region42: #{forward.1} parent=0
    _
  %s7 = ssub.s32 1, %s5
  %s8 = scalar_select 0, %s7, %s5
  $region1: #{forward.1} parent=0
    #allocation2 [shape = 'u8[4096]{0}', space=vmem, size = 0x1000, scoped, tag = 'input window, operand 0, single buffered']
    #allocation3 [shape = 's32[1]{0}', space=sflag, size = 0x4, scoped, tag = 'scoped memory for forward.1']
    #allocation4 [shape = 's32[1]{0}', space=sflag, size = 0x4, scoped, tag = 'scoped memory for forward.1']
    #allocation5 [shape = 'u8[8192]{0}', space=vmem, size = 0x2000, scoped, tag = 'input window, operand 1, single buffered']
    #allocation6 [shape = 's32[1]{0}', space=sflag, size = 0x4, scoped, tag = 'scoped memory for forward.1']
    #allocation7 [shape = 'u8[65536]{0}', space=vmem, size = 0x10000, scoped, tag = 'input window, operand 2, single buffered']
    #allocation8 [shape = 'u8[2048]{0}', space=vmem, size = 0x800, scoped, tag = 'input window, operand 3, single buffered']
    #allocation9 [shape = 's32[1]{0}', space=sflag, size = 0x4, scoped, tag = 'scoped memory for forward.1']
    #allocation10 [shape = 'u8[4096]{0}', space=vmem, size = 0x1000, scoped, tag = 'output window, operand 0, single buffered']
    %9 = vsyncpa [#allocation3], 0
    %10 = vsyncpa [#allocation6], 0
    %11 = vsyncpa [#allocation9], 0
    %12 = vsyncpa [#allocation4], 0
    // Predicated region
    $region2: #{forward.1} parent=1 // pred_check
      _
    $region3: #{forward.1} parent=1 // pred_check_branch
      %14 = sbr.rel (0) target = $region5
    $region4: #{forward.1} parent=1 // pred_region
      %16 = vsyncadd [#allocation3], 0
      %s18 = sshll.u32 %s0, 4
      %s19 = int_to_ptr.hbm [resolvable:$true] %s18
      %s20 = sshll.u32 [#allocation2], 4
      %s21 = int_to_ptr.vmem [resolvable:$true] %s20
      %23 = dma.hbm_to_vmem [thread:$0]  %s19, 128, %s21, [#allocation3]
    $region5: #{forward.1} parent=1 // pred_fallthru
      _
    // Predicated region
    $region6: #{forward.1} parent=1 // pred_check
      _
    $region7: #{forward.1} parent=1 // pred_check_branch
      %25 = sbr.rel (0) target = $region9
    $region8: #{forward.1} parent=1 // pred_region
      %27 = vsyncadd [#allocation6], 0
      %s28 = sshll.u32 %s1, 4
      %s29 = int_to_ptr.hbm [resolvable:$true] %s28
      %s30 = sshll.u32 [#allocation5], 4
      %s31 = int_to_ptr.vmem [resolvable:$true] %s30
      %36 = dma.hbm_to_vmem [thread:$0]  %s29, 256, %s31, [#allocation6], 64, 64, 4
    $region9: #{forward.1} parent=1 // pred_fallthru
      _
    // Predicated region
    $region10: #{forward.1} parent=1 // pred_check
      _
    $region11: #{forward.1} parent=1 // pred_check_branch
      %38 = sbr.rel (0) target = $region13
    $region12: #{forward.1} parent=1 // pred_region
      %40 = vsyncadd [#allocation6], 0
      %s41 = sshll.u32 %s2, 4
      %s42 = int_to_ptr.hbm [resolvable:$true] %s41
      %s43 = sshll.u32 [#allocation7], 4
      %s44 = int_to_ptr.vmem [resolvable:$true] %s43
      %49 = dma.hbm_to_vmem [thread:$0]  %s42, 2048, %s44, [#allocation6], 64, 64, 4
    $region13: #{forward.1} parent=1 // pred_fallthru
      _
    // Predicated region
    $region14: #{forward.1} parent=1 // pred_check
      _
    $region15: #{forward.1} parent=1 // pred_check_branch
      %51 = sbr.rel (0) target = $region17
    $region16: #{forward.1} parent=1 // pred_region
      %53 = vsyncadd [#allocation9], 0
      %s55 = sshll.u32 %s3, 4
      %s56 = int_to_ptr.hbm [resolvable:$true] %s55
      %s57 = sshll.u32 [#allocation8], 4
      %s58 = int_to_ptr.vmem [resolvable:$true] %s57
      %60 = dma.hbm_to_vmem [thread:$0]  %s56, 64, %s58, [#allocation9]
    $region17: #{forward.1} parent=1 // pred_fallthru
      _
    // Predicated region
    $region18: #{forward.1} parent=1 // pred_check
      _
    $region19: #{forward.1} parent=1 // pred_check_branch
      %62 = sbr.rel (0) target = $region21
    $region20: #{forward.1} parent=1 // pred_region
      %64 = dma.done [#allocation3], 128
    $region21: #{forward.1} parent=1 // pred_fallthru
      _
    // Predicated region
    $region22: #{forward.1} parent=1 // pred_check
      _
    $region23: #{forward.1} parent=1 // pred_check_branch
      %66 = sbr.rel (0) target = $region25
    $region24: #{forward.1} parent=1 // pred_region
      %68 = dma.done [#allocation6], 256
    $region25: #{forward.1} parent=1 // pred_fallthru
      _
    // Predicated region
    $region26: #{forward.1} parent=1 // pred_check
      _
    $region27: #{forward.1} parent=1 // pred_check_branch
      %70 = sbr.rel (0) target = $region29
    $region28: #{forward.1} parent=1 // pred_region
      %72 = dma.done [#allocation6], 2048
    $region29: #{forward.1} parent=1 // pred_fallthru
      _
    // Predicated region
    $region30: #{forward.1} parent=1 // pred_check
      _
    $region31: #{forward.1} parent=1 // pred_check_branch
      %74 = sbr.rel (0) target = $region33
    $region32: #{forward.1} parent=1 // pred_region
      %76 = dma.done [#allocation9], 64
    $region33: #{forward.1} parent=1 // pred_fallthru
      _
    %v78 = vld [vmem:[#allocation8] sm:$0x7]
    %v79 = vld [vmem:[#allocation2] sm:$0xff]
    %v80 = vpack.c.bf16 %v79, %v79
    %v81 = vld [vmem:[#allocation5] sm:$0xf]
    %v82 = vld [vmem:[#allocation5 + $0x4] sm:$0xf]
    %v83 = vld [vmem:[#allocation5 + $0x8] sm:$0xf]
    %v84 = vld [vmem:[#allocation5 + $0xc] sm:$0xf]
    %v85 = vperm.slane %v78, 0
    %v90 = vunpack.c.l.b16 %v81
    %v91 = vunpack.c.l.b16 %v82
    %v92 = vunpack.c.l.b16 %v83
    %v93 = vunpack.c.l.b16 %v84
    %v94 = vpack.c.b16 %v91, %v90
    %v95 = vpack.c.b16 %v93, %v92
    %vm98 = vcmask 261120
    %v100 = vsel %vm98, %v80, 0
    %102 = vmatpush.bf16.msra.mxu0 0
    %103 = vmatpush.bf16.msra.mxu0 0
    %104 = vmatpush.bf16.msra.mxu0 0
    %105 = vmatpush.bf16.msra.mxu0 0
    %106 = vmatpush.bf16.msra.mxu0 0
    %107 = vmatpush.bf16.msra.mxu0 0
    %108 = vmatpush.bf16.msra.mxu0 %v95
    %109 = vmatpush.bf16.msra.mxu0 %v94
    %110 = vmatmul.bf16.gmra.mxu0 %v100
    %v111 = vpop.f32.mrf.mxu0
    %v112 = vadd.f32 %v85, %v111
    %v113 = vpop.f32.mrf.mxu0
    %114 = vdwg.mxu0
    %v115 = vmax.f32 %v112, 0.0
    %v116 = vld [vmem:[#allocation7] sm:$0xf]
    %v117 = vld [vmem:[#allocation7 + $0x4] sm:$0xf]
    %v118 = vld [vmem:[#allocation7 + $0x8] sm:$0xf]
    %v119 = vld [vmem:[#allocation7 + $0xc] sm:$0xf]
    %v120 = vld [vmem:[#allocation7 + $0x10] sm:$0xf]
    %v121 = vld [vmem:[#allocation7 + $0x14] sm:$0xf]
    %v122 = vld [vmem:[#allocation7 + $0x18] sm:$0xf]
    %v123 = vld [vmem:[#allocation7 + $0x1c] sm:$0xf]
    %v124 = vld [vmem:[#allocation7 + $0x20] sm:$0xf]
    %v125 = vld [vmem:[#allocation7 + $0x24] sm:$0xf]
    %v126 = vld [vmem:[#allocation7 + $0x28] sm:$0xf]
    %v127 = vld [vmem:[#allocation7 + $0x2c] sm:$0xf]
    %v128 = vld [vmem:[#allocation7 + $0x30] sm:$0xf]
    %v129 = vld [vmem:[#allocation7 + $0x34] sm:$0xf]
    %v130 = vld [vmem:[#allocation7 + $0x38] sm:$0xf]
    %v131 = vld [vmem:[#allocation7 + $0x3c] sm:$0xf]
    %v132 = vpack.c.bf16 %v115, %v115
    %v133 = vperm.slane %v78, 1
    %v150 = vunpack.c.l.b16 %v116
    %v151 = vunpack.c.l.b16 %v117
    %v152 = vunpack.c.l.b16 %v118
    %v153 = vunpack.c.l.b16 %v119
    %v154 = vunpack.c.l.b16 %v120
    %v155 = vunpack.c.l.b16 %v121
    %v156 = vunpack.c.l.b16 %v122
    %v157 = vunpack.c.l.b16 %v123
    %v158 = vunpack.c.l.b16 %v124
    %v159 = vunpack.c.l.b16 %v125
    %v160 = vunpack.c.l.b16 %v126
    %v161 = vunpack.c.l.b16 %v127
    %v162 = vunpack.c.l.b16 %v128
    %v163 = vunpack.c.l.b16 %v129
    %v164 = vunpack.c.l.b16 %v130
    %v165 = vunpack.c.l.b16 %v131
    %v166 = vpack.c.b16 %v151, %v150
    %v167 = vpack.c.b16 %v153, %v152
    %v168 = vpack.c.b16 %v155, %v154
    %v169 = vpack.c.b16 %v157, %v156
    %v170 = vpack.c.b16 %v159, %v158
    %v171 = vpack.c.b16 %v161, %v160
    %v172 = vpack.c.b16 %v163, %v162
    %v173 = vpack.c.b16 %v165, %v164
    %182 = vmatpush.bf16.msra.mxu0 %v173
    %183 = vmatpush.bf16.msra.mxu0 %v172
    %184 = vmatpush.bf16.msra.mxu0 %v171
    %185 = vmatpush.bf16.msra.mxu0 %v170
    %186 = vmatpush.bf16.msra.mxu0 %v169
    %187 = vmatpush.bf16.msra.mxu0 %v168
    %188 = vmatpush.bf16.msra.mxu0 %v167
    %189 = vmatpush.bf16.msra.mxu0 %v166
    %190 = vmatmul.bf16.gmra.mxu0 %v132
    %v191 = vpop.f32.mrf.mxu0
    %v192 = vadd.f32 %v133, %v191
    %v193 = vpop.f32.mrf.mxu0
    %194 = vdwg.mxu0
    %v195 = vmax.f32 %v192, 0.0
    %s196 = scalar_lea.vmem [#allocation7], 64
    %v197 = vld [vmem:[%s196] sm:$0xf]
    %v198 = vld [vmem:[%s196 + $0x4] sm:$0xf]
    %v199 = vld [vmem:[%s196 + $0x8] sm:$0xf]
    %v200 = vld [vmem:[%s196 + $0xc] sm:$0xf]
    %v201 = vld [vmem:[%s196 + $0x10] sm:$0xf]
    %v202 = vld [vmem:[%s196 + $0x14] sm:$0xf]
    %v203 = vld [vmem:[%s196 + $0x18] sm:$0xf]
    %v204 = vld [vmem:[%s196 + $0x1c] sm:$0xf]
    %v205 = vld [vmem:[%s196 + $0x20] sm:$0xf]
    %v206 = vld [vmem:[%s196 + $0x24] sm:$0xf]
    %v207 = vld [vmem:[%s196 + $0x28] sm:$0xf]
    %v208 = vld [vmem:[%s196 + $0x2c] sm:$0xf]
    %v209 = vld [vmem:[%s196 + $0x30] sm:$0xf]
    %v210 = vld [vmem:[%s196 + $0x34] sm:$0xf]
    %v211 = vld [vmem:[%s196 + $0x38] sm:$0xf]
    %v212 = vld [vmem:[%s196 + $0x3c] sm:$0xf]
    %v213 = vpack.c.bf16 %v195, %v195
    %v214 = vperm.slane %v78, 2
    %v231 = vunpack.c.l.b16 %v197
    %v232 = vunpack.c.l.b16 %v198
    %v233 = vunpack.c.l.b16 %v199
    %v234 = vunpack.c.l.b16 %v200
    %v235 = vunpack.c.l.b16 %v201
    %v236 = vunpack.c.l.b16 %v202
    %v237 = vunpack.c.l.b16 %v203
    %v238 = vunpack.c.l.b16 %v204
    %v239 = vunpack.c.l.b16 %v205
    %v240 = vunpack.c.l.b16 %v206
    %v241 = vunpack.c.l.b16 %v207
    %v242 = vunpack.c.l.b16 %v208
    %v243 = vunpack.c.l.b16 %v209
    %v244 = vunpack.c.l.b16 %v210
    %v245 = vunpack.c.l.b16 %v211
    %v246 = vunpack.c.l.b16 %v212
    %v247 = vpack.c.b16 %v232, %v231
    %v248 = vpack.c.b16 %v234, %v233
    %v249 = vpack.c.b16 %v236, %v235
    %v250 = vpack.c.b16 %v238, %v237
    %v251 = vpack.c.b16 %v240, %v239
    %v252 = vpack.c.b16 %v242, %v241
    %v253 = vpack.c.b16 %v244, %v243
    %v254 = vpack.c.b16 %v246, %v245
    %263 = vmatpush.bf16.msra.mxu0 %v254
    %264 = vmatpush.bf16.msra.mxu0 %v253
    %265 = vmatpush.bf16.msra.mxu0 %v252
    %266 = vmatpush.bf16.msra.mxu0 %v251
    %267 = vmatpush.bf16.msra.mxu0 %v250
    %268 = vmatpush.bf16.msra.mxu0 %v249
    %269 = vmatpush.bf16.msra.mxu0 %v248
    %270 = vmatpush.bf16.msra.mxu0 %v247
    %271 = vmatmul.bf16.gmra.mxu0 %v213
    %v272 = vpop.f32.mrf.mxu0
    %v273 = vadd.f32 %v214, %v272
    %v274 = vpop.f32.mrf.mxu0
    %275 = vdwg.mxu0
    %276 = vst [vmem:[#allocation10] sm:$0xff] %v273
    // Predicated region
    $region34: #{forward.1} parent=1 // pred_check
      _
    $region35: #{forward.1} parent=1 // pred_check_branch
      %278 = sbr.rel (0) target = $region37
    $region36: #{forward.1} parent=1 // pred_region
      %280 = vsyncadd [#allocation4], 0
      %s282 = sshll.u32 [#allocation10], 4
      %s283 = int_to_ptr.vmem [resolvable:$true] %s282
      %s284 = sshll.u32 %s4, 4
      %s285 = int_to_ptr.hbm [resolvable:$true] %s284
      %287 = dma.vmem_to_hbm [thread:$0]  %s283, 128, %s285, [#allocation4]
    $region37: #{forward.1} parent=1 // pred_fallthru
      _
    // Predicated region
    $region38: #{forward.1} parent=1 // pred_check
      _
    $region39: #{forward.1} parent=1 // pred_check_branch
      %289 = sbr.rel (0) target = $region41
    $region40: #{forward.1} parent=1 // pred_region
      %291 = dma.done [#allocation4], 128
    $region41: #{forward.1} parent=1 // pred_fallthru
      _
    %292 = vsyncpa [#allocation3], 1
    %293 = vsyncpa [#allocation6], 1
    %294 = vsyncpa [#allocation9], 1
    %295 = vsyncpa [#allocation4], 1

</llo_original>
